<compile_context>
chip_gen: v6e
topology: v6e:2x2x1
jax: 0.10.0
libtpu: 0.0.40
codegen_flags: <defaults>
</compile_context>

<pallas_src>
import functools
import math

import jax
import jax.numpy as jnp
from jax import lax
from jax.experimental import pallas as pl
from jax.experimental.pallas import tpu as pltpu


def _contract_kernel(x_ref, o_ref, *, order, d):
    """x_ref / o_ref are (D, TN) tiles in VMEM (D sublane rows, TN lanes)."""
    x = x_ref[...].astype(jnp.float32)

    if order is None or order == 2:
        # L2 / Frobenius norm. Use sum-of-squares + rsqrt:
        #   mag < 1  <=>  s < 1, and (2 - 1/mag)*(x/mag) == (2 - r)*(x*r), r = rsqrt(s)
        # rsqrt runs on the EUP (separate bundle slot) and avoids sqrt + two divides.
        s = x[0:1, :] * x[0:1, :]
        for i in range(1, d):
            s = s + x[i:i + 1, :] * x[i:i + 1, :]
        r = lax.rsqrt(s)
        contracted = (2.0 - r) * (x * r)
        # Values in the unselected branch (inf/nan at s == 0) never propagate.
        out = jnp.where(s < 1.0, x, contracted)
    elif math.isinf(order):
        # L_inf norm over the coordinate rows.
        mag = jnp.abs(x[0:1, :])
        for i in range(1, d):
            mag = jnp.maximum(mag, jnp.abs(x[i:i + 1, :]))
        inv = 1.0 / mag
        contracted = (2.0 - inv) * (x * inv)
        out = jnp.where(mag < 1.0, x, contracted)
    else:
        # General p-norm (order == 1 avoids the pow round-trip).
        if order == 1:
            mag = jnp.abs(x[0:1, :])
            for i in range(1, d):
                mag = mag + jnp.abs(x[i:i + 1, :])
        else:
            s = jnp.power(jnp.abs(x[0:1, :]), order)
            for i in range(1, d):
                s = s + jnp.power(jnp.abs(x[i:i + 1, :]), order)
            mag = jnp.power(s, 1.0 / order)
        inv = 1.0 / mag
        contracted = (2.0 - inv) * (x * inv)
        out = jnp.where(mag < 1.0, x, contracted)

    o_ref[...] = out.astype(o_ref.dtype)


def scene_contraction(positions, order=None, *, tile_n: int = 16384):
    """JAX wrapper mirroring SceneContraction.forward.

    positions: array of shape (..., D). Returns array of same shape/dtype.
    order: None (Frobenius/L2), float('inf'), or a p-norm order.
    """
    orig_shape = positions.shape
    orig_dtype = positions.dtype
    d = orig_shape[-1]
    n = 1
    for s in orig_shape[:-1]:
        n *= s

    # Lane-dense layout: (N, D) -> (D, N); the point axis becomes the lane axis.
    # (Layout plumbing only; the kernel itself sees full-width, unmasked tiles.)
    x = positions.reshape(n, d).T

    # Large lane tiles for throughput; for small inputs, cap the tile so the grid
    # keeps >= 2 steps (v7x has 2 TensorCores), rounded to a multiple of 128 lanes.
    tn = tile_n
    if n <= tn:
        tn = max(128, pl.cdiv(pl.cdiv(n, 2), 128) * 128)
    grid = (pl.cdiv(n, tn),)

    kernel = functools.partial(_contract_kernel, order=order, d=d)

    out = pl.pallas_call(
        kernel,
        out_shape=jax.ShapeDtypeStruct((d, n), orig_dtype),
        grid=grid,
        in_specs=[pl.BlockSpec((d, tn), lambda i: (0, i))],
        out_specs=pl.BlockSpec((d, tn), lambda i: (0, i)),
        compiler_params=pltpu.CompilerParams(
            dimension_semantics=("parallel",)
        ),
    )(x)

    return out.T.reshape(orig_shape)


def _reference(positions, order=None):
    """Pure-JAX reference matching the PyTorch forward."""
    if order is None:
        mag = jnp.linalg.norm(positions, axis=-1, keepdims=True)
    elif math.isinf(order):
        mag = jnp.max(jnp.abs(positions), axis=-1, keepdims=True)
    else:
        mag = jnp.linalg.norm(positions, ord=order, axis=-1, keepdims=True)
    return jnp.where(mag < 1, positions, (2 - 1 / mag) * (positions / mag))


if __name__ == "__main__":
    k0, k1 = jax.random.split(jax.random.PRNGKey(0))

    # Ray-sample style input: (num_rays=2, samples_per_ray=128, xyz=3), scaled so
    # some points lie inside and some outside the unit sphere.
    positions = 3.0 * jax.random.normal(k0, (2, 128, 3), dtype=jnp.float32)

    # Frobenius-norm contraction (default order=None).
    out = jax.block_until_ready(scene_contraction(positions, order=None))
    ref = _reference(positions, order=None)

    # L_inf contraction (SceneContraction(order=float('inf'))).
    out_inf = jax.block_until_ready(scene_contraction(positions, order=float("inf")))
    ref_inf = _reference(positions, order=float("inf"))

    # Ragged point count (N not a multiple of 128): exercises boundary-block masking
    # with no wrapper-side padding/slicing.
    pos2 = 2.5 * jax.random.normal(k1, (3, 100, 3), dtype=jnp.float32)
    out2 = jax.block_until_ready(scene_contraction(pos2, order=None))
    ref2 = _reference(pos2, order=None)

    assert out.shape == positions.shape and out.dtype == positions.dtype
    assert jnp.allclose(out, ref, atol=1e-5, rtol=1e-5)
    assert out_inf.shape == positions.shape and out_inf.dtype == positions.dtype
    assert jnp.allclose(out_inf, ref_inf, atol=1e-5, rtol=1e-5)
    assert out2.shape == pos2.shape and out2.dtype == pos2.dtype
    assert jnp.allclose(out2, ref2, atol=1e-5, rtol=1e-5)
    print("KERNEL_OK")
</pallas_src>

<mosaic_0001>
module attributes {stable_mosaic.version = 11 : i64} {
  func.func @_contract_kernel(%arg0: i32, %arg1: memref<3x128xf32, #tpu.memory_space<vmem>>, %arg2: memref<3x128xf32, #tpu.memory_space<vmem>>) attributes {dimension_semantics = [#tpu.dimension_semantics<parallel>], iteration_bounds = array<i64: 2>, scalar_prefetch = 0 : i64, scratch_operands = 0 : i64, tpu.core_type = #tpu.core_type<tc>, window_params = [{transform_indices = @transform_0, window_bounds = array<i64: 3, 128>}, {transform_indices = @transform_1, window_bounds = array<i64: 3, 128>}]} {
    %c0 = arith.constant 0 : index
    %c0_0 = arith.constant 0 : index
    %0 = vector.load %arg1[%c0, %c0_0] : memref<3x128xf32, #tpu.memory_space<vmem>>, vector<3x128xf32>
    %1 = vector.extract_strided_slice %0 {offsets = [0, 0], sizes = [1, 128], strides = [1, 1]} : vector<3x128xf32> to vector<1x128xf32>
    %2 = vector.extract_strided_slice %0 {offsets = [0, 0], sizes = [1, 128], strides = [1, 1]} : vector<3x128xf32> to vector<1x128xf32>
    %3 = arith.mulf %1, %2 : vector<1x128xf32>
    %4 = vector.extract_strided_slice %0 {offsets = [1, 0], sizes = [1, 128], strides = [1, 1]} : vector<3x128xf32> to vector<1x128xf32>
    %5 = vector.extract_strided_slice %0 {offsets = [1, 0], sizes = [1, 128], strides = [1, 1]} : vector<3x128xf32> to vector<1x128xf32>
    %6 = arith.mulf %4, %5 : vector<1x128xf32>
    %7 = arith.addf %3, %6 : vector<1x128xf32>
    %8 = vector.extract_strided_slice %0 {offsets = [2, 0], sizes = [1, 128], strides = [1, 1]} : vector<3x128xf32> to vector<1x128xf32>
    %9 = vector.extract_strided_slice %0 {offsets = [2, 0], sizes = [1, 128], strides = [1, 1]} : vector<3x128xf32> to vector<1x128xf32>
    %10 = arith.mulf %8, %9 : vector<1x128xf32>
    %11 = arith.addf %7, %10 : vector<1x128xf32>
    %12 = math.rsqrt %11 : vector<1x128xf32>
    %cst = arith.constant 2.000000e+00 : f32
    %13 = vector.broadcast %cst : f32 to vector<1x128xf32>
    %14 = arith.subf %13, %12 : vector<1x128xf32>
    %15 = vector.broadcast %12 : vector<1x128xf32> to vector<3x128xf32>
    %16 = arith.mulf %0, %15 : vector<3x128xf32>
    %17 = vector.broadcast %14 : vector<1x128xf32> to vector<3x128xf32>
    %18 = arith.mulf %17, %16 : vector<3x128xf32>
    %cst_1 = arith.constant 1.000000e+00 : f32
    %19 = vector.broadcast %cst_1 : f32 to vector<1x128xf32>
    %20 = arith.cmpf olt, %11, %19 : vector<1x128xf32>
    %21 = vector.shape_cast %20 : vector<1x128xi1> to vector<1x128xi1>
    %22 = vector.broadcast %21 : vector<1x128xi1> to vector<3x128xi1>
    %23 = arith.select %22, %0, %18 : vector<3x128xi1>, vector<3x128xf32>
    %c0_2 = arith.constant 0 : index
    %c0_3 = arith.constant 0 : index
    %24 = vector.load %arg2[%c0_2, %c0_3] : memref<3x128xf32, #tpu.memory_space<vmem>>, vector<3x128xf32>
    tpu.vector_store %arg2[%c0_2, %c0_3], %23 {strides = array<i32>} : memref<3x128xf32, #tpu.memory_space<vmem>>, vector<3x128xf32>,
    return
  }
  func.func @transform_0(%arg0: i32) -> (i32, i32) {
    %c0_i32 = arith.constant 0 : i32
    %c0_i32_0 = arith.constant 0 : i32
    return %c0_i32, %arg0 : i32, i32
  }
  func.func @transform_1(%arg0: i32) -> (i32, i32) {
    %c0_i32 = arith.constant 0 : i32
    %c0_i32_0 = arith.constant 0 : i32
    return %c0_i32, %arg0 : i32, i32
  }
}

</mosaic_0001>

<llo_original>
// kernel: tpu_custom_call.1
$region0: #{tpu_custom_call.1}
  #allocation0 [shape = 'u32[]', space=smem, size = 0x4, offset = 0x4, fixed_abs, tag = 'smem constant byte address 0x4 - core index']
  #allocation1 [shape = 'u32[144,128]{1,0:T(1,128)}', space=vmem, size = 0x12000, scoped, tag = 'internal scratch']
  %s0 = inlined_call_operand.hbm [shape: f32[3,256], index: 0, kind: input, shape index: {}]
  %s1 = inlined_call_operand.hbm [shape: f32[3,256], index: 1, kind: output, shape index: {}]
  %s2 = sld [smem:[#allocation0]]
  $region41: #{tpu_custom_call.1} parent=0
    _
  %s4 = ssub.s32 1, %s2
  %s5 = scalar_select 0, %s4, %s2
  $region1: #{tpu_custom_call.1} parent=0
    #allocation2 [shape = 'u8[4096]{0}', space=vmem, size = 0x1000, scoped, tag = 'input window, operand 0']
    #allocation3 [shape = 's32[2]{0}', space=sflag, size = 0x8, scoped, tag = 'scoped memory for tpu_custom_call.1']
    #allocation4 [shape = 's32[2]{0}', space=sflag, size = 0x8, scoped, tag = 'scoped memory for tpu_custom_call.1']
    #allocation5 [shape = 'u8[4096]{0}', space=vmem, size = 0x1000, scoped, tag = 'output window, operand 0']
    %6 = vsyncpa [#allocation3], 0
    %s7 = scalar_lea.sflag [#allocation3], 1
    %8 = vsyncpa %s7, 0
    %9 = vsyncpa [#allocation4], 0
    %s10 = scalar_lea.sflag [#allocation4], 1
    %11 = vsyncpa %s10, 0
    loop: start=0, step=1, limit=4
    $region2: #{tpu_custom_call.1} parent=1 // loop_pre_header
      _
    $region3: #{tpu_custom_call.1} parent=1 // loop_header
      %s13 = sphi 0, %s17
      %p14 = scmp.ge.s32.totalorder %s13, 4
      %s23 = sphi 0, %s25
      %s26 = sphi 0, %s23
      %s27 = sphi 0, %s26
      %s43 = sphi 0, %s27
      %s49 = sphi 0, %s51
      %s52 = sphi 0, %s49
      %s53 = sphi 0, %s52
      %s69 = sphi 0, %s53
    $region4: #{tpu_custom_call.1} parent=1 // loop_header_branch
      %16 = sbr.rel (%p14) target = $region8
    $region5: #{tpu_custom_call.1} parent=1 // loop_body
      %s18 = ssub.s32 %s13, 1
      %s19 = ssub.s32 %s13, 2
      %s20 = sadd.s32 %s13, 1
      %s21 = ssub.s32 %s13, %s20
      %p22 = scmp.eq.s32.totalorder %s21, 0
      %s24 = sadd.s32 %s23, 1
      %s25 = scalar_select %p22, %s23, %s24
      %p28 = pneg %p22
      %p29 = scmp.eq.s32.totalorder %s13, 1
      %p30 = por %p28, %p29
      %p31 = scmp.ne.s32.totalorder %s23, %s26
      %p32 = scmp.eq.s32.totalorder %s13, 0
      %p33 = por %p31, %p32
      %p34 = scmp.ne.s32.totalorder %s23, %s26
      %p35 = scmp.eq.s32.totalorder %s18, 1
      %p36 = por %p34, %p35
      %p37 = scmp.ne.s32.totalorder %s26, %s27
      %p38 = scmp.eq.s32.totalorder %s18, 0
      %p39 = por %p37, %p38
      %p40 = scmp.ne.s32.totalorder %s26, %s27
      %p41 = scmp.eq.s32.totalorder %s19, 1
      %p42 = por %p40, %p41
      %p44 = scmp.ne.s32.totalorder %s27, %s43
      %p45 = scmp.eq.s32.totalorder %s19, 0
      %p46 = por %p44, %p45
      %s47 = ssub.s32 %s13, %s20
      %p48 = scmp.eq.s32.totalorder %s47, 0
      %s50 = sadd.s32 %s49, 1
      %s51 = scalar_select %p48, %s49, %s50
      %p54 = pneg %p48
      %p55 = scmp.eq.s32.totalorder %s13, 1
      %p56 = por %p54, %p55
      %p57 = scmp.ne.s32.totalorder %s49, %s52
      %p58 = scmp.eq.s32.totalorder %s13, 0
      %p59 = por %p57, %p58
      %p60 = scmp.ne.s32.totalorder %s49, %s52
      %p61 = scmp.eq.s32.totalorder %s18, 1
      %p62 = por %p60, %p61
      %p63 = scmp.ne.s32.totalorder %s52, %s53
      %p64 = scmp.eq.s32.totalorder %s18, 0
      %p65 = por %p63, %p64
      %p66 = scmp.ne.s32.totalorder %s52, %s53
      %p67 = scmp.eq.s32.totalorder %s19, 1
      %p68 = por %p66, %p67
      %p70 = scmp.ne.s32.totalorder %s53, %s69
      %p71 = scmp.eq.s32.totalorder %s19, 0
      %p72 = por %p70, %p71
      %p73 = scmp.le.s32.totalorder 1, %s13
      %p74 = scmp.lt.s32.totalorder %s13, 3
      %p75 = pnand %p73, %p74
      %p76 = pneg %p75
      // Predicated region
      $region9: #{tpu_custom_call.1} parent=5 // pred_check
        _
      $region10: #{tpu_custom_call.1} parent=5 // pred_check_branch
        %78 = sbr.rel (%p75) target = $region12
      $region11: #{tpu_custom_call.1} parent=5 // pred_region
        %s79 = ssub.s32 %s13, 1
      $region12: #{tpu_custom_call.1} parent=5 // pred_fallthru
        _
      %p80 = scmp.lt.s32.totalorder %s13, 2
      // Predicated region
      $region13: #{tpu_custom_call.1} parent=5 // pred_check
        %p81 = pneg %p80
      $region14: #{tpu_custom_call.1} parent=5 // pred_check_branch
        %83 = sbr.rel (%p81) target = $region16
      $region15: #{tpu_custom_call.1} parent=5 // pred_region
        // Predicated region
        $region17: #{tpu_custom_call.1} parent=15 // pred_check
          %p84 = pneg %p33
        $region18: #{tpu_custom_call.1} parent=15 // pred_check_branch
          %86 = sbr.rel (%p84) target = $region20
        $region19: #{tpu_custom_call.1} parent=15 // pred_region
          %s87 = sand.u32 %s23, 1
          %s88 = scalar_lea.sflag [#allocation3], %s87
          %s89 = sand.u32 %s23, 1
          %s90 = smul.addr %s89, 4
          %s91 = scalar_lea.vmem [#allocation2], %s90
          %s93 = ssub.s32 64, 64
          %94 = vsyncadd %s88, %s93
          %s95 = smul.addr %s13, 64
          %s96 = scalar_lea.hbm %s0, %s95
          %s98 = sshll.u32 %s91, 4
          %s99 = int_to_ptr.vmem [resolvable:$true] %s98
          %101 = dma.hbm_to_vmem [thread:$0]  %s96, 64, %s99, %s88
        $region20: #{tpu_custom_call.1} parent=15 // pred_fallthru
          _
      $region16: #{tpu_custom_call.1} parent=5 // pred_fallthru
        _
      %p102 = scmp.le.s32.totalorder 1, %s13
      %p103 = scmp.lt.s32.totalorder %s13, 3
      %p104 = pnand %p102, %p103
      %p105 = pneg %p104
      // Predicated region
      $region21: #{tpu_custom_call.1} parent=5 // pred_check
        _
      $region22: #{tpu_custom_call.1} parent=5 // pred_check_branch
        %107 = sbr.rel (%p104) target = $region24
      $region23: #{tpu_custom_call.1} parent=5 // pred_region
        %s108 = ssub.s32 %s13, 1
        %s109 = sand.u32 %s26, 1
        %s110 = scalar_lea.sflag [#allocation3], %s109
        %s111 = sand.u32 %s26, 1
        %s112 = smul.addr %s111, 4
        %s113 = scalar_lea.vmem [#allocation2], %s112
        // Predicated region
        $region25: #{tpu_custom_call.1} parent=23 // pred_check
          %p114 = pneg %p39
        $region26: #{tpu_custom_call.1} parent=23 // pred_check_branch
          %116 = sbr.rel (%p114) target = $region28
        $region27: #{tpu_custom_call.1} parent=23 // pred_region
          %117 = dma.done %s110, 64
        $region28: #{tpu_custom_call.1} parent=23 // pred_fallthru
          _
        %s118 = sand.u32 %s26, 1
        %s119 = scalar_lea.sflag [#allocation3], %s118
        %s120 = sand.u32 %s26, 1
        %s121 = smul.addr %s120, 4
        %s122 = scalar_lea.vmem [#allocation2], %s121
        %p123 = pneg %p39
        %p124 = pneg %p36
        %p125 = pneg %p65
        %p126 = pneg %p62
        %s127 = sand.u32 %s52, 1
        %s128 = scalar_lea.sflag [#allocation4], %s127
        %s129 = sand.u32 %s52, 1
        %s130 = smul.addr %s129, 4
        %s131 = scalar_lea.vmem [#allocation5], %s130
        %v132 = vld [vmem:[%s113] sm:$0x7]
        %v133 = vmul.f32 %v132, %v132
        %v135 = vrot.slane %v133, 1
        %v137 = vadd.f32 %v133, %v135
        %v138 = vrot.slane %v133, 2
        %v140 = vadd.f32 %v137, %v138
        %v141 = vrsqrt.pop %v140
        %v142 = vsub.f32 2.0, %v141
        %v143 = vlaneseq
        %v144 = vshrl.u32 %v143, 7
        %v145 = vsub.s32 0, %v144
        %v146 = vrot.slane %v141, %v145
        %v147 = vmul.f32 %v132, %v146
        %v148 = vlaneseq
        %v149 = vshrl.u32 %v148, 7
        %v150 = vsub.s32 0, %v149
        %v151 = vrot.slane %v142, %v150
        %v152 = vmul.f32 %v151, %v147
        %vm153 = vcmp.lt.f32.partialorder %v140, 1.0
        %v154 = vsel %vm153, 1, 0
        %v155 = vlaneseq
        %v156 = vshrl.u32 %v155, 7
        %v157 = vsub.s32 0, %v156
        %v158 = vrot.slane %v154, %v157
        %vm159 = vcmp.eq.s32.totalorder %v158, 1
        %v160 = vsel %vm159, %v132, %v152
        %161 = vst [vmem:[%s131] sm:$0x7] %v160
        %s162 = sand.u32 %s52, 1
        %s163 = scalar_lea.sflag [#allocation4], %s162
        %s164 = sand.u32 %s52, 1
        %s165 = smul.addr %s164, 4
        %s166 = scalar_lea.vmem [#allocation5], %s165
        // Predicated region
        $region29: #{tpu_custom_call.1} parent=23 // pred_check
          %p167 = pneg %p62
        $region30: #{tpu_custom_call.1} parent=23 // pred_check_branch
          %169 = sbr.rel (%p167) target = $region32
        $region31: #{tpu_custom_call.1} parent=23 // pred_region
          %s171 = ssub.s32 64, 64
          %172 = vsyncadd %s163, %s171
          %s173 = smul.addr %s18, 64
          %s174 = scalar_lea.hbm %s1, %s173
          %s176 = sshll.u32 %s166, 4
          %s177 = int_to_ptr.vmem [resolvable:$true] %s176
          %179 = dma.vmem_to_hbm [thread:$0]  %s177, 64, %s174, %s163
        $region32: #{tpu_custom_call.1} parent=23 // pred_fallthru
          _
      $region24: #{tpu_custom_call.1} parent=5 // pred_fallthru
        _
      %p180 = scmp.le.s32.totalorder 2, %s13
      // Predicated region
      $region33: #{tpu_custom_call.1} parent=5 // pred_check
        %p181 = pneg %p180
      $region34: #{tpu_custom_call.1} parent=5 // pred_check_branch
        %183 = sbr.rel (%p181) target = $region36
      $region35: #{tpu_custom_call.1} parent=5 // pred_region
        %s184 = ssub.s32 %s13, 2
        // Predicated region
        $region37: #{tpu_custom_call.1} parent=35 // pred_check
          %p185 = pneg %p68
        $region38: #{tpu_custom_call.1} parent=35 // pred_check_branch
          %187 = sbr.rel (%p185) target = $region40
        $region39: #{tpu_custom_call.1} parent=35 // pred_region
          %s188 = sand.u32 %s53, 1
          %s189 = scalar_lea.sflag [#allocation4], %s188
          %s190 = sand.u32 %s53, 1
          %s191 = smul.addr %s190, 4
          %s192 = scalar_lea.vmem [#allocation5], %s191
          %193 = dma.done %s189, 64
        $region40: #{tpu_custom_call.1} parent=35 // pred_fallthru
          _
      $region36: #{tpu_custom_call.1} parent=5 // pred_fallthru
        _
    $region6: #{tpu_custom_call.1} parent=1 // loop_footer
      %s17 = sadd.s32 1, %s13
    $region7: #{tpu_custom_call.1} parent=1 // loop_footer_branch
      %12 = sbr.rel target = $region3
    $region8: #{tpu_custom_call.1} parent=1 // loop_exit
      _
    %194 = vsyncpa [#allocation3], 1
    %s195 = scalar_lea.sflag [#allocation3], 1
    %196 = vsyncpa %s195, 1
    %197 = vsyncpa [#allocation4], 1
    %s198 = scalar_lea.sflag [#allocation4], 1
    %199 = vsyncpa %s198, 1

</llo_original>
